<compile_context>
chip_gen: v7x
topology: tpu7x:2x2x1
jax: 0.10.0
libtpu: 0.0.40
codegen_flags: <defaults>
</compile_context>

<pallas_src>
import functools

import jax
import jax.numpy as jnp
import numpy as np
from jax.experimental import pallas as pl
from jax.experimental.pallas import tpu as pltpu

EPS = 1e-5

# Column indices inside the packed f32 per-channel parameter slab.
_G1, _BE1, _B1, _G2, _BE2, _B2, _G3, _BE3, _B3 = range(9)


def residual_kernel(need_skip, H, W, in_dim, half, out_dim,
                    x_ref, mask_ref, wslab_ref, pslab_ref, o_ref):
    N, _, HW = x_ref.shape
    NP = N * HW  # lane-axis length of every activation slab

    pslab = pslab_ref[...]                     # (Cmax, ncols) f32
    wslab = wslab_ref[...]                     # (Cmax, Kw)    bf16
    masks = mask_ref[...]                      # (9, NP)       f32

    def pcol(j, c):                            # packed per-channel param -> (c, 1)
        return pslab[0:c, j:j + 1]

    skb_col = 9 if need_skip else None
    w1_base = 10 if need_skip else 9
    w1 = pslab[0:half, w1_base:w1_base + in_dim]            # (half, in)  f32 exact

    w2m = wslab[0:half, 0:9 * half]                          # (half, 9*half) bf16
    w3m = wslab[0:out_dim, 9 * half:10 * half]               # (out, half)    bf16
    if need_skip:
        skwm = wslab[0:out_dim, 10 * half:10 * half + in_dim]  # (out, in)   bf16

    # Channels-leading, lane-dense activations (C, N*H*W).  At toy N this is
    # two aligned vreg copies.  TODO(synk): at production N keep the 3D ref (or
    # accept one wrapper transpose) to avoid re-materializing the full slab.
    x = jnp.concatenate([x_ref[n] for n in range(N)], axis=1)   # (Cin, NP)

    def bn_relu(h, g, b):
        # Training-mode BatchNorm2d in one pass: sum and sum-of-squares
        # together (biased variance via E[x^2] - mean^2, f32), affine, ReLU.
        s1 = jnp.sum(h, axis=1, keepdims=True)
        s2 = jnp.sum(h * h, axis=1, keepdims=True)
        mean = s1 * (1.0 / NP)
        var = s2 * (1.0 / NP) - mean * mean
        scale = jax.lax.rsqrt(var + EPS) * g
        shift = b - mean * scale
        return jnp.maximum(h * scale + shift, 0.0)

    def conv1x1_mxu(h, w_b, b):
        # (Co, Ci) x (Ci, NP) on the MXU: bf16 operands, f32 accumulation.
        return jnp.dot(w_b, h.astype(jnp.bfloat16),
                       preferred_element_type=jnp.float32) + b

    def conv1x1_vpu(h, w, b):
        # conv1 stays a tiny f32 VPU FMA: its rounding error would otherwise be
        # amplified by the two downstream BatchNorms.  Weight-column broadcasts
        # are materialized once each; pairwise tree shortens the dep chain.
        terms = [w[:, ci:ci + 1] * h[ci:ci + 1, :] for ci in range(h.shape[0])]
        while len(terms) > 1:
            nxt = [terms[i] + terms[i + 1] for i in range(0, len(terms) - 1, 2)]
            if len(terms) % 2:
                nxt.append(terms[-1])
            terms = nxt
        return terms[0] + b

    # bn1 -> relu -> conv1 (1x1, f32 VPU)
    h = bn_relu(x, pcol(_G1, in_dim), pcol(_BE1, in_dim))
    h = conv1x1_vpu(h, w1, pcol(_B1, half))

    # bn2 -> relu
    h = bn_relu(h, pcol(_G2, half), pcol(_BE2, half))

    # conv2: 3x3, stride 1, pad 1.  Each tap is one XLU lane-roll of the
    # flattened (n, y, x) axis times a precomputed border mask; the 9 taps are
    # stacked into one (9*Ci, NP) slab and contracted in a single MXU matmul.
    taps = []
    for ky in range(3):
        for kx in range(3):
            s = (ky - 1) * W + (kx - 1)                     # source offset
            k = ky * 3 + kx
            t = h if s == 0 else pltpu.roll(h, (-s) % NP, axis=1) * masks[k:k + 1, :]
            taps.append(t)
    stack = jnp.concatenate(taps, axis=0).astype(jnp.bfloat16)   # (9*half, NP)
    h = jnp.dot(w2m, stack, preferred_element_type=jnp.float32) + pcol(_B2, half)

    # bn3 -> relu -> conv3 (1x1, MXU)
    h = bn_relu(h, pcol(_G3, half), pcol(_BE3, half))
    out = conv1x1_mxu(h, w3m, pcol(_B3, out_dim))

    # skip path: 1x1 conv (MXU) if in_dim != out_dim, else identity on raw x.
    res = conv1x1_mxu(x, skwm, pcol(skb_col, out_dim)) if need_skip else x
    out = out + res

    # Write back in NCHW order with lane-aligned, unmasked stores.
    for n in range(N):
        o_ref[n] = out[:, n * HW:(n + 1) * HW]


def _border_masks(N, H, W):
    # Static 0/1 masks (one per 3x3 tap) over the flattened (n, y, x) axis,
    # zeroing samples that fall into the conv's zero padding / wrap around.
    ys, xs = np.meshgrid(np.arange(H), np.arange(W), indexing="ij")
    rows = []
    for ky in range(3):
        for kx in range(3):
            dy, dx = ky - 1, kx - 1
            valid = ((ys + dy >= 0) & (ys + dy < H)
                     & (xs + dx >= 0) & (xs + dx < W))
            rows.append(np.tile(valid.reshape(-1), N))
    return jnp.asarray(np.stack(rows).astype(np.float32))        # (9, N*H*W)


def residual_forward(x_nchw, params):
    N, in_dim, H, W = x_nchw.shape
    out_dim = params["w3"].shape[0]
    half = params["w1"].shape[0]
    need_skip = in_dim != out_dim
    HW = H * W
    Cmax = max(in_dim, half, out_dim)

    # NCHW consumed directly: only free reshapes, no XLA transposes.
    x = x_nchw.reshape(N, in_dim, HW).astype(jnp.float32)

    # --- packed f32 per-channel slab: BN params, conv biases, conv1 weight ---
    def fcol(v):
        v = jnp.asarray(v, jnp.float32).reshape(-1)
        return jnp.pad(v, (0, Cmax - v.shape[0]))

    cols = [params["g1"], params["beta1"], params["b1c"],
            params["g2"], params["beta2"], params["b2c"],
            params["g3"], params["beta3"], params["b3c"]]
    if need_skip:
        cols.append(params["skip_b"])
    w1 = params["w1"][:, :, 0, 0]                                 # (half, in)
    cols += [w1[:, ci] for ci in range(in_dim)]
    pslab = jnp.stack([fcol(c) for c in cols], axis=1)            # (Cmax, ncols)

    # --- packed bf16 MXU-weight slab: w2 (9 taps flattened), w3, [skip] ------
    def wpad(w):
        w = jnp.asarray(w, jnp.float32)
        return jnp.pad(w, ((0, Cmax - w.shape[0]), (0, 0)))

    # columns ordered (tap k = ky*3+kx, ci) to match the in-kernel tap stack.
    w2_mat = jnp.transpose(params["w2"], (0, 2, 3, 1)).reshape(half, 9 * half)
    blocks = [wpad(w2_mat), wpad(params["w3"][:, :, 0, 0])]
    if need_skip:
        blocks.append(wpad(params["skip_w"][:, :, 0, 0]))
    wslab = jnp.concatenate(blocks, axis=1).astype(jnp.bfloat16)

    args = (x, _border_masks(N, H, W), wslab, pslab)              # 4 DMAs total

    out = pl.pallas_call(
        functools.partial(residual_kernel, need_skip, H, W, in_dim, half, out_dim),
        out_shape=jax.ShapeDtypeStruct((N, out_dim, HW), jnp.float32),
        in_specs=[pl.BlockSpec(memory_space=pltpu.MemorySpace.VMEM)] * len(args),
        out_specs=pl.BlockSpec(memory_space=pltpu.MemorySpace.VMEM),
        compiler_params=pltpu.CompilerParams(vmem_limit_bytes=32 * 1024 * 1024),
    )(*args)
    # TODO(synk): for production shapes, tile with a grid over N / H-row blocks
    # (dimension_semantics=("parallel", ...)) so both v7x TensorCores are used,
    # re-derive tile sizes + vmem_limit_bytes for v7x's 64 MiB VMEM, keep
    # inter-layer activations in bf16 with f32 BN stats, and consider fusing
    # adjacent residual blocks into one pallas_call; single-shot is optimal at
    # these toy sizes.
    return out.reshape(N, out_dim, H, W)


def init_params(key, in_dim, out_dim):
    half = out_dim // 2
    ks = jax.random.split(key, 14)
    nrm = lambda k, s: 0.1 * jax.random.normal(k, s, jnp.float32)
    return dict(
        w1=nrm(ks[0], (half, in_dim, 1, 1)),   b1c=nrm(ks[1], (half,)),
        w2=nrm(ks[2], (half, half, 3, 3)),     b2c=nrm(ks[3], (half,)),
        w3=nrm(ks[4], (out_dim, half, 1, 1)),  b3c=nrm(ks[5], (out_dim,)),
        skip_w=nrm(ks[6], (out_dim, in_dim, 1, 1)), skip_b=nrm(ks[7], (out_dim,)),
        g1=1.0 + nrm(ks[8], (in_dim,)),  beta1=nrm(ks[9], (in_dim,)),
        g2=1.0 + nrm(ks[10], (half,)),   beta2=nrm(ks[11], (half,)),
        g3=1.0 + nrm(ks[12], (half,)),   beta3=nrm(ks[13], (half,)),
    )


def residual_ref(x, params, need_skip):
    """Pure-JAX reference mirroring the PyTorch module (training-mode BN).

    Convs run at HIGHEST precision so the comparison budget is the kernel's.
    """
    def bn(h, g, b):
        mean = jnp.mean(h, axis=(0, 2, 3), keepdims=True)
        var = jnp.mean(jnp.square(h - mean), axis=(0, 2, 3), keepdims=True)
        return ((h - mean) * jax.lax.rsqrt(var + EPS)
                * g.reshape(1, -1, 1, 1) + b.reshape(1, -1, 1, 1))

    def conv(h, w, b, pad):
        y = jax.lax.conv_general_dilated(
            h, w, (1, 1), [(pad, pad), (pad, pad)],
            dimension_numbers=("NCHW", "OIHW", "NCHW"),
            precision=jax.lax.Precision.HIGHEST)
        return y + b.reshape(1, -1, 1, 1)

    res = conv(x, params["skip_w"], params["skip_b"], 0) if need_skip else x
    h = jax.nn.relu(bn(x, params["g1"], params["beta1"]))
    h = conv(h, params["w1"], params["b1c"], 0)
    h = jax.nn.relu(bn(h, params["g2"], params["beta2"]))
    h = conv(h, params["w2"], params["b2c"], 1)
    h = jax.nn.relu(bn(h, params["g3"], params["beta3"]))
    h = conv(h, params["w3"], params["b3c"], 0)
    return h + res


if __name__ == "__main__":
    key = jax.random.PRNGKey(0)
    kx1, kp1, kx2, kp2 = jax.random.split(key, 4)

    # Tolerance sized for bf16 MXU operands in the 3x3 / output / skip convs
    # (reference convs run at HIGHEST precision).
    TOL = dict(rtol=2e-2, atol=2e-2)

    # Case 1: in_dim != out_dim  ->  1x1 skip conv path.
    N, in_dim, out_dim, H, W = 2, 4, 8, 16, 16
    x1 = jax.random.normal(kx1, (N, in_dim, H, W), jnp.float32)
    p1 = init_params(kp1, in_dim, out_dim)
    y1 = jax.block_until_ready(residual_forward(x1, p1))
    np.testing.assert_allclose(np.asarray(y1),
                               np.asarray(residual_ref(x1, p1, True)), **TOL)

    # Case 2: in_dim == out_dim  ->  identity skip path.
    x2 = jax.random.normal(kx2, (N, out_dim, H, W), jnp.float32)
    p2 = init_params(kp2, out_dim, out_dim)
    y2 = jax.block_until_ready(residual_forward(x2, p2))
    np.testing.assert_allclose(np.asarray(y2),
                               np.asarray(residual_ref(x2, p2, False)), **TOL)

    print("KERNEL_OK")
</pallas_src>

<mosaic_0001>
module attributes {stable_mosaic.version = 11 : i64} {
  func.func @residual_kernel(%arg0: memref<2x4x256xf32, #tpu.memory_space<vmem>>, %arg1: memref<9x512xf32, #tpu.memory_space<vmem>>, %arg2: memref<8x44xbf16, #tpu.memory_space<vmem>>, %arg3: memref<8x14xf32, #tpu.memory_space<vmem>>, %arg4: memref<2x8x256xf32, #tpu.memory_space<vmem>>) attributes {dimension_semantics = [], scalar_prefetch = 0 : i64, scratch_operands = 0 : i64, tpu.core_type = #tpu.core_type<tc>} {
    %c0 = arith.constant 0 : index
    %c0_0 = arith.constant 0 : index
    %0 = vector.load %arg3[%c0, %c0_0] : memref<8x14xf32, #tpu.memory_space<vmem>>, vector<8x14xf32>
    %c0_1 = arith.constant 0 : index
    %c0_2 = arith.constant 0 : index
    %1 = vector.load %arg2[%c0_1, %c0_2] : memref<8x44xbf16, #tpu.memory_space<vmem>>, vector<8x44xbf16>
    %c0_3 = arith.constant 0 : index
    %c0_4 = arith.constant 0 : index
    %2 = vector.load %arg1[%c0_3, %c0_4] : memref<9x512xf32, #tpu.memory_space<vmem>>, vector<9x512xf32>
    %3 = vector.extract_strided_slice %0 {offsets = [0, 10], sizes = [4, 4], strides = [1, 1]} : vector<8x14xf32> to vector<4x4xf32>
    %4 = vector.extract_strided_slice %1 {offsets = [0, 0], sizes = [4, 36], strides = [1, 1]} : vector<8x44xbf16> to vector<4x36xbf16>
    %5 = vector.extract_strided_slice %1 {offsets = [0, 36], sizes = [8, 4], strides = [1, 1]} : vector<8x44xbf16> to vector<8x4xbf16>
    %6 = vector.extract_strided_slice %1 {offsets = [0, 40], sizes = [8, 4], strides = [1, 1]} : vector<8x44xbf16> to vector<8x4xbf16>
    %c0_5 = arith.constant 0 : index
    %c0_6 = arith.constant 0 : index
    %c0_7 = arith.constant 0 : index
    %7 = vector.load %arg0[%c0_5, %c0_6, %c0_7] : memref<2x4x256xf32, #tpu.memory_space<vmem>>, vector<1x4x256xf32>
    %8 = vector.shape_cast %7 : vector<1x4x256xf32> to vector<4x256xf32>
    %c1 = arith.constant 1 : index
    %c0_8 = arith.constant 0 : index
    %c0_9 = arith.constant 0 : index
    %9 = vector.load %arg0[%c1, %c0_8, %c0_9] : memref<2x4x256xf32, #tpu.memory_space<vmem>>, vector<1x4x256xf32>
    %10 = vector.shape_cast %9 : vector<1x4x256xf32> to vector<4x256xf32>
    %11 = tpu.concatenate %8, %10 in 1 : vector<4x256xf32>, vector<4x256xf32> -> vector<4x512xf32>
    %12 = vector.extract_strided_slice %0 {offsets = [0, 0], sizes = [4, 1], strides = [1, 1]} : vector<8x14xf32> to vector<4x1xf32>
    %13 = vector.extract_strided_slice %0 {offsets = [0, 1], sizes = [4, 1], strides = [1, 1]} : vector<8x14xf32> to vector<4x1xf32>
    %cst = arith.constant dense<0.000000e+00> : vector<4xf32>
    %14 = vector.multi_reduction <add>, %11, %cst [1] : vector<4x512xf32> to vector<4xf32>
    %15 = vector.shape_cast %14 : vector<4xf32> to vector<4x1xf32>
    %16 = arith.mulf %11, %11 : vector<4x512xf32>
    %cst_10 = arith.constant dense<0.000000e+00> : vector<4xf32>
    %17 = vector.multi_reduction <add>, %16, %cst_10 [1] : vector<4x512xf32> to vector<4xf32>
    %18 = vector.shape_cast %17 : vector<4xf32> to vector<4x1xf32>
    %cst_11 = arith.constant 0.001953125 : f32
    %19 = vector.broadcast %cst_11 : f32 to vector<4x1xf32>
    %20 = arith.mulf %15, %19 : vector<4x1xf32>
    %cst_12 = arith.constant 0.001953125 : f32
    %21 = vector.broadcast %cst_12 : f32 to vector<4x1xf32>
    %22 = arith.mulf %18, %21 : vector<4x1xf32>
    %23 = arith.mulf %20, %20 : vector<4x1xf32>
    %24 = arith.subf %22, %23 : vector<4x1xf32>
    %cst_13 = arith.constant 9.99999974E-6 : f32
    %25 = vector.broadcast %cst_13 : f32 to vector<4x1xf32>
    %26 = arith.addf %24, %25 : vector<4x1xf32>
    %27 = math.rsqrt %26 : vector<4x1xf32>
    %28 = arith.mulf %27, %12 : vector<4x1xf32>
    %29 = arith.mulf %20, %28 : vector<4x1xf32>
    %30 = arith.subf %13, %29 : vector<4x1xf32>
    %31 = vector.broadcast %28 : vector<4x1xf32> to vector<4x512xf32>
    %32 = arith.mulf %11, %31 : vector<4x512xf32>
    %33 = vector.broadcast %30 : vector<4x1xf32> to vector<4x512xf32>
    %34 = arith.addf %32, %33 : vector<4x512xf32>
    %cst_14 = arith.constant 0.000000e+00 : f32
    %35 = vector.broadcast %cst_14 : f32 to vector<4x512xf32>
    %36 = arith.maximumf %34, %35 : vector<4x512xf32>
    %37 = vector.extract_strided_slice %0 {offsets = [0, 2], sizes = [4, 1], strides = [1, 1]} : vector<8x14xf32> to vector<4x1xf32>
    %38 = vector.extract_strided_slice %3 {offsets = [0, 0], sizes = [4, 1], strides = [1, 1]} : vector<4x4xf32> to vector<4x1xf32>
    %39 = vector.extract_strided_slice %36 {offsets = [0, 0], sizes = [1, 512], strides = [1, 1]} : vector<4x512xf32> to vector<1x512xf32>
    %40 = vector.broadcast %38 : vector<4x1xf32> to vector<4x512xf32>
    %41 = vector.broadcast %39 : vector<1x512xf32> to vector<4x512xf32>
    %42 = arith.mulf %40, %41 : vector<4x512xf32>
    %43 = vector.extract_strided_slice %3 {offsets = [0, 1], sizes = [4, 1], strides = [1, 1]} : vector<4x4xf32> to vector<4x1xf32>
    %44 = vector.extract_strided_slice %36 {offsets = [1, 0], sizes = [1, 512], strides = [1, 1]} : vector<4x512xf32> to vector<1x512xf32>
    %45 = vector.broadcast %43 : vector<4x1xf32> to vector<4x512xf32>
    %46 = vector.broadcast %44 : vector<1x512xf32> to vector<4x512xf32>
    %47 = arith.mulf %45, %46 : vector<4x512xf32>
    %48 = vector.extract_strided_slice %3 {offsets = [0, 2], sizes = [4, 1], strides = [1, 1]} : vector<4x4xf32> to vector<4x1xf32>
    %49 = vector.extract_strided_slice %36 {offsets = [2, 0], sizes = [1, 512], strides = [1, 1]} : vector<4x512xf32> to vector<1x512xf32>
    %50 = vector.broadcast %48 : vector<4x1xf32> to vector<4x512xf32>
    %51 = vector.broadcast %49 : vector<1x512xf32> to vector<4x512xf32>
    %52 = arith.mulf %50, %51 : vector<4x512xf32>
    %53 = vector.extract_strided_slice %3 {offsets = [0, 3], sizes = [4, 1], strides = [1, 1]} : vector<4x4xf32> to vector<4x1xf32>
    %54 = vector.extract_strided_slice %36 {offsets = [3, 0], sizes = [1, 512], strides = [1, 1]} : vector<4x512xf32> to vector<1x512xf32>
    %55 = vector.broadcast %53 : vector<4x1xf32> to vector<4x512xf32>
    %56 = vector.broadcast %54 : vector<1x512xf32> to vector<4x512xf32>
    %57 = arith.mulf %55, %56 : vector<4x512xf32>
    %58 = arith.addf %42, %47 : vector<4x512xf32>
    %59 = arith.addf %52, %57 : vector<4x512xf32>
    %60 = arith.addf %58, %59 : vector<4x512xf32>
    %61 = vector.broadcast %37 : vector<4x1xf32> to vector<4x512xf32>
    %62 = arith.addf %60, %61 : vector<4x512xf32>
    %63 = vector.extract_strided_slice %0 {offsets = [0, 3], sizes = [4, 1], strides = [1, 1]} : vector<8x14xf32> to vector<4x1xf32>
    %64 = vector.extract_strided_slice %0 {offsets = [0, 4], sizes = [4, 1], strides = [1, 1]} : vector<8x14xf32> to vector<4x1xf32>
    %cst_15 = arith.constant dense<0.000000e+00> : vector<4xf32>
    %65 = vector.multi_reduction <add>, %62, %cst_15 [1] : vector<4x512xf32> to vector<4xf32>
    %66 = vector.shape_cast %65 : vector<4xf32> to vector<4x1xf32>
    %67 = arith.mulf %62, %62 : vector<4x512xf32>
    %cst_16 = arith.constant dense<0.000000e+00> : vector<4xf32>
    %68 = vector.multi_reduction <add>, %67, %cst_16 [1] : vector<4x512xf32> to vector<4xf32>
    %69 = vector.shape_cast %68 : vector<4xf32> to vector<4x1xf32>
    %cst_17 = arith.constant 0.001953125 : f32
    %70 = vector.broadcast %cst_17 : f32 to vector<4x1xf32>
    %71 = arith.mulf %66, %70 : vector<4x1xf32>
    %cst_18 = arith.constant 0.001953125 : f32
    %72 = vector.broadcast %cst_18 : f32 to vector<4x1xf32>
    %73 = arith.mulf %69, %72 : vector<4x1xf32>
    %74 = arith.mulf %71, %71 : vector<4x1xf32>
    %75 = arith.subf %73, %74 : vector<4x1xf32>
    %cst_19 = arith.constant 9.99999974E-6 : f32
    %76 = vector.broadcast %cst_19 : f32 to vector<4x1xf32>
    %77 = arith.addf %75, %76 : vector<4x1xf32>
    %78 = math.rsqrt %77 : vector<4x1xf32>
    %79 = arith.mulf %78, %63 : vector<4x1xf32>
    %80 = arith.mulf %71, %79 : vector<4x1xf32>
    %81 = arith.subf %64, %80 : vector<4x1xf32>
    %82 = vector.broadcast %79 : vector<4x1xf32> to vector<4x512xf32>
    %83 = arith.mulf %62, %82 : vector<4x512xf32>
    %84 = vector.broadcast %81 : vector<4x1xf32> to vector<4x512xf32>
    %85 = arith.addf %83, %84 : vector<4x512xf32>
    %cst_20 = arith.constant 0.000000e+00 : f32
    %86 = vector.broadcast %cst_20 : f32 to vector<4x512xf32>
    %87 = arith.maximumf %85, %86 : vector<4x512xf32>
    %c17_i32 = arith.constant 17 : i32
    %88 = tpu.dynamic_rotate %87 by %c17_i32 dim 1 : vector<4x512xf32>, i32 -> vector<4x512xf32>
    %89 = vector.extract_strided_slice %2 {offsets = [0, 0], sizes = [1, 512], strides = [1, 1]} : vector<9x512xf32> to vector<1x512xf32>
    %90 = vector.broadcast %89 : vector<1x512xf32> to vector<4x512xf32>
    %91 = arith.mulf %88, %90 : vector<4x512xf32>
    %c16_i32 = arith.constant 16 : i32
    %92 = tpu.dynamic_rotate %87 by %c16_i32 dim 1 : vector<4x512xf32>, i32 -> vector<4x512xf32>
    %93 = vector.extract_strided_slice %2 {offsets = [1, 0], sizes = [1, 512], strides = [1, 1]} : vector<9x512xf32> to vector<1x512xf32>
    %94 = vector.broadcast %93 : vector<1x512xf32> to vector<4x512xf32>
    %95 = arith.mulf %92, %94 : vector<4x512xf32>
    %c15_i32 = arith.constant 15 : i32
    %96 = tpu.dynamic_rotate %87 by %c15_i32 dim 1 : vector<4x512xf32>, i32 -> vector<4x512xf32>
    %97 = vector.extract_strided_slice %2 {offsets = [2, 0], sizes = [1, 512], strides = [1, 1]} : vector<9x512xf32> to vector<1x512xf32>
    %98 = vector.broadcast %97 : vector<1x512xf32> to vector<4x512xf32>
    %99 = arith.mulf %96, %98 : vector<4x512xf32>
    %c1_i32 = arith.constant 1 : i32
    %100 = tpu.dynamic_rotate %87 by %c1_i32 dim 1 : vector<4x512xf32>, i32 -> vector<4x512xf32>
    %101 = vector.extract_strided_slice %2 {offsets = [3, 0], sizes = [1, 512], strides = [1, 1]} : vector<9x512xf32> to vector<1x512xf32>
    %102 = vector.broadcast %101 : vector<1x512xf32> to vector<4x512xf32>
    %103 = arith.mulf %100, %102 : vector<4x512xf32>
    %c511_i32 = arith.constant 511 : i32
    %104 = tpu.dynamic_rotate %87 by %c511_i32 dim 1 : vector<4x512xf32>, i32 -> vector<4x512xf32>
    %105 = vector.extract_strided_slice %2 {offsets = [5, 0], sizes = [1, 512], strides = [1, 1]} : vector<9x512xf32> to vector<1x512xf32>
    %106 = vector.broadcast %105 : vector<1x512xf32> to vector<4x512xf32>
    %107 = arith.mulf %104, %106 : vector<4x512xf32>
    %c497_i32 = arith.constant 497 : i32
    %108 = tpu.dynamic_rotate %87 by %c497_i32 dim 1 : vector<4x512xf32>, i32 -> vector<4x512xf32>
    %109 = vector.extract_strided_slice %2 {offsets = [6, 0], sizes = [1, 512], strides = [1, 1]} : vector<9x512xf32> to vector<1x512xf32>
    %110 = vector.broadcast %109 : vector<1x512xf32> to vector<4x512xf32>
    %111 = arith.mulf %108, %110 : vector<4x512xf32>
    %c496_i32 = arith.constant 496 : i32
    %112 = tpu.dynamic_rotate %87 by %c496_i32 dim 1 : vector<4x512xf32>, i32 -> vector<4x512xf32>
    %113 = vector.extract_strided_slice %2 {offsets = [7, 0], sizes = [1, 512], strides = [1, 1]} : vector<9x512xf32> to vector<1x512xf32>
    %114 = vector.broadcast %113 : vector<1x512xf32> to vector<4x512xf32>
    %115 = arith.mulf %112, %114 : vector<4x512xf32>
    %c495_i32 = arith.constant 495 : i32
    %116 = tpu.dynamic_rotate %87 by %c495_i32 dim 1 : vector<4x512xf32>, i32 -> vector<4x512xf32>
    %117 = vector.extract_strided_slice %2 {offsets = [8, 0], sizes = [1, 512], strides = [1, 1]} : vector<9x512xf32> to vector<1x512xf32>
    %118 = vector.broadcast %117 : vector<1x512xf32> to vector<4x512xf32>
    %119 = arith.mulf %116, %118 : vector<4x512xf32>
    %120 = tpu.concatenate %91, %95, %99, %103, %87, %107, %111, %115, %119 in 0 : vector<4x512xf32>, vector<4x512xf32>, vector<4x512xf32>, vector<4x512xf32>, vector<4x512xf32>, vector<4x512xf32>, vector<4x512xf32>, vector<4x512xf32>, vector<4x512xf32> -> vector<36x512xf32>
    %121 = arith.truncf %120 : vector<36x512xf32> to vector<36x512xbf16>
    %cst_21 = arith.constant dense<0.000000e+00> : vector<4x512xf32>
    %122 = tpu.matmul %4, %121, %cst_21 {dimension_numbers = #tpu.dot_dimension_numbers<[1], [0], [0], [1], [0, 0, 1, 1], [], []>} : vector<4x36xbf16>, vector<36x512xbf16>, vector<4x512xf32> -> vector<4x512xf32>
    %123 = vector.extract_strided_slice %0 {offsets = [0, 5], sizes = [4, 1], strides = [1, 1]} : vector<8x14xf32> to vector<4x1xf32>
    %124 = vector.broadcast %123 : vector<4x1xf32> to vector<4x512xf32>
    %125 = arith.addf %122, %124 : vector<4x512xf32>
    %126 = vector.extract_strided_slice %0 {offsets = [0, 6], sizes = [4, 1], strides = [1, 1]} : vector<8x14xf32> to vector<4x1xf32>
    %127 = vector.extract_strided_slice %0 {offsets = [0, 7], sizes = [4, 1], strides = [1, 1]} : vector<8x14xf32> to vector<4x1xf32>
    %cst_22 = arith.constant dense<0.000000e+00> : vector<4xf32>
    %128 = vector.multi_reduction <add>, %125, %cst_22 [1] : vector<4x512xf32> to vector<4xf32>
    %129 = vector.shape_cast %128 : vector<4xf32> to vector<4x1xf32>
    %130 = arith.mulf %125, %125 : vector<4x512xf32>
    %cst_23 = arith.constant dense<0.000000e+00> : vector<4xf32>
    %131 = vector.multi_reduction <add>, %130, %cst_23 [1] : vector<4x512xf32> to vector<4xf32>
    %132 = vector.shape_cast %131 : vector<4xf32> to vector<4x1xf32>
    %cst_24 = arith.constant 0.001953125 : f32
    %133 = vector.broadcast %cst_24 : f32 to vector<4x1xf32>
    %134 = arith.mulf %129, %133 : vector<4x1xf32>
    %cst_25 = arith.constant 0.001953125 : f32
    %135 = vector.broadcast %cst_25 : f32 to vector<4x1xf32>
    %136 = arith.mulf %132, %135 : vector<4x1xf32>
    %137 = arith.mulf %134, %134 : vector<4x1xf32>
    %138 = arith.subf %136, %137 : vector<4x1xf32>
    %cst_26 = arith.constant 9.99999974E-6 : f32
    %139 = vector.broadcast %cst_26 : f32 to vector<4x1xf32>
    %140 = arith.addf %138, %139 : vector<4x1xf32>
    %141 = math.rsqrt %140 : vector<4x1xf32>
    %142 = arith.mulf %141, %126 : vector<4x1xf32>
    %143 = arith.mulf %134, %142 : vector<4x1xf32>
    %144 = arith.subf %127, %143 : vector<4x1xf32>
    %145 = vector.broadcast %142 : vector<4x1xf32> to vector<4x512xf32>
    %146 = arith.mulf %125, %145 : vector<4x512xf32>
    %147 = vector.broadcast %144 : vector<4x1xf32> to vector<4x512xf32>
    %148 = arith.addf %146, %147 : vector<4x512xf32>
    %cst_27 = arith.constant 0.000000e+00 : f32
    %149 = vector.broadcast %cst_27 : f32 to vector<4x512xf32>
    %150 = arith.maximumf %148, %149 : vector<4x512xf32>
    %151 = vector.extract_strided_slice %0 {offsets = [0, 8], sizes = [8, 1], strides = [1, 1]} : vector<8x14xf32> to vector<8x1xf32>
    %152 = arith.truncf %150 : vector<4x512xf32> to vector<4x512xbf16>
    %cst_28 = arith.constant dense<0.000000e+00> : vector<8x512xf32>
    %153 = tpu.matmul %5, %152, %cst_28 {dimension_numbers = #tpu.dot_dimension_numbers<[1], [0], [0], [1], [0, 0, 1, 1], [], []>} : vector<8x4xbf16>, vector<4x512xbf16>, vector<8x512xf32> -> vector<8x512xf32>
    %154 = vector.broadcast %151 : vector<8x1xf32> to vector<8x512xf32>
    %155 = arith.addf %153, %154 : vector<8x512xf32>
    %156 = vector.extract_strided_slice %0 {offsets = [0, 9], sizes = [8, 1], strides = [1, 1]} : vector<8x14xf32> to vector<8x1xf32>
    %157 = arith.truncf %11 : vector<4x512xf32> to vector<4x512xbf16>
    %cst_29 = arith.constant dense<0.000000e+00> : vector<8x512xf32>
    %158 = tpu.matmul %6, %157, %cst_29 {dimension_numbers = #tpu.dot_dimension_numbers<[1], [0], [0], [1], [0, 0, 1, 1], [], []>} : vector<8x4xbf16>, vector<4x512xbf16>, vector<8x512xf32> -> vector<8x512xf32>
    %159 = vector.broadcast %156 : vector<8x1xf32> to vector<8x512xf32>
    %160 = arith.addf %158, %159 : vector<8x512xf32>
    %161 = arith.addf %155, %160 : vector<8x512xf32>
    %162 = vector.extract_strided_slice %161 {offsets = [0, 0], sizes = [8, 256], strides = [1, 1]} : vector<8x512xf32> to vector<8x256xf32>
    %c0_30 = arith.constant 0 : index
    %c0_31 = arith.constant 0 : index
    %c0_32 = arith.constant 0 : index
    %163 = vector.load %arg4[%c0_30, %c0_31, %c0_32] : memref<2x8x256xf32, #tpu.memory_space<vmem>>, vector<1x8x256xf32>
    %164 = vector.shape_cast %163 : vector<1x8x256xf32> to vector<8x256xf32>
    %165 = vector.shape_cast %162 : vector<8x256xf32> to vector<1x8x256xf32>
    tpu.vector_store %arg4[%c0_30, %c0_31, %c0_32], %165 {strides = array<i32>} : memref<2x8x256xf32, #tpu.memory_space<vmem>>, vector<1x8x256xf32>,
    %166 = vector.extract_strided_slice %161 {offsets = [0, 256], sizes = [8, 256], strides = [1, 1]} : vector<8x512xf32> to vector<8x256xf32>
    %c1_33 = arith.constant 1 : index
    %c0_34 = arith.constant 0 : index
    %c0_35 = arith.constant 0 : index
    %167 = vector.load %arg4[%c1_33, %c0_34, %c0_35] : memref<2x8x256xf32, #tpu.memory_space<vmem>>, vector<1x8x256xf32>
    %168 = vector.shape_cast %167 : vector<1x8x256xf32> to vector<8x256xf32>
    %169 = vector.shape_cast %166 : vector<8x256xf32> to vector<1x8x256xf32>
    tpu.vector_store %arg4[%c1_33, %c0_34, %c0_35], %169 {strides = array<i32>} : memref<2x8x256xf32, #tpu.memory_space<vmem>>, vector<1x8x256xf32>,
    return
  }
}

</mosaic_0001>

<llo_original>
// kernel: tpu_custom_call.1
$region0: #{tpu_custom_call.1}
  #allocation0 [shape = 'u32[]', space=smem, size = 0x4, offset = 0x4, fixed_abs, tag = 'smem constant byte address 0x4 - core index']
  #allocation1 [shape = 'u32[144,128]{1,0:T(1,128)}', space=vmem, size = 0x12000, scoped, tag = 'internal scratch']
  %s0 = inlined_call_operand.hbm [shape: f32[2,4,256], index: 0, kind: input, shape index: {}]
  %s1 = inlined_call_operand.hbm [shape: f32[9,512], index: 1, kind: input, shape index: {}]
  %s2 = inlined_call_operand.hbm [shape: bf16[8,44], index: 2, kind: input, shape index: {}]
  %s3 = inlined_call_operand.vmem [shape: f32[8,14], index: 3, kind: input, shape index: {}]
  %s4 = inlined_call_operand.hbm [shape: f32[2,8,256], index: 4, kind: output, shape index: {}]
  %s5 = sld [smem:[#allocation0]]
  $region38: #{tpu_custom_call.1} parent=0
    _
  %s7 = ssub.s32 1, %s5
  %s8 = scalar_select 0, %s7, %s5
  $region1: #{tpu_custom_call.1} parent=0
    #allocation2 [shape = 'u8[8192]{0}', space=vmem, size = 0x2000, scoped, tag = 'input window, operand 0, single buffered']
    #allocation3 [shape = 's32[1]{0}', space=sflag, size = 0x4, scoped, tag = 'scoped memory for tpu_custom_call.1']
    #allocation4 [shape = 's32[1]{0}', space=sflag, size = 0x4, scoped, tag = 'scoped memory for tpu_custom_call.1']
    #allocation5 [shape = 'u8[32768]{0}', space=vmem, size = 0x8000, scoped, tag = 'input window, operand 1, single buffered']
    #allocation6 [shape = 's32[1]{0}', space=sflag, size = 0x4, scoped, tag = 'scoped memory for tpu_custom_call.1']
    #allocation7 [shape = 'u8[2048]{0}', space=vmem, size = 0x800, scoped, tag = 'input window, operand 2, single buffered']
    #allocation8 [shape = 'u8[16384]{0}', space=vmem, size = 0x4000, scoped, tag = 'output window, operand 0, single buffered']
    %9 = vsyncpa [#allocation3], 0
    %10 = vsyncpa [#allocation6], 0
    %11 = vsyncpa [#allocation4], 0
    // Predicated region
    $region2: #{tpu_custom_call.1} parent=1 // pred_check
      _
    $region3: #{tpu_custom_call.1} parent=1 // pred_check_branch
      %13 = sbr.rel (0) target = $region5
    $region4: #{tpu_custom_call.1} parent=1 // pred_region
      %s15 = ssub.s32 256, 256
      %16 = vsyncadd [#allocation3], %s15
      %s17 = sshll.u32 [#allocation2], 4
      %s18 = int_to_ptr.vmem [resolvable:$true] %s17
      %23 = dma.hbm_to_vmem [thread:$0]  %s0, 256, %s18, [#allocation3], 128, 128, 8
    $region5: #{tpu_custom_call.1} parent=1 // pred_fallthru
      _
    // Predicated region
    $region6: #{tpu_custom_call.1} parent=1 // pred_check
      _
    $region7: #{tpu_custom_call.1} parent=1 // pred_check_branch
      %25 = sbr.rel (0) target = $region9
    $region8: #{tpu_custom_call.1} parent=1 // pred_region
      %s27 = ssub.s32 1024, 1024
      %28 = vsyncadd [#allocation6], %s27
      %s29 = sshll.u32 [#allocation5], 4
      %s30 = int_to_ptr.vmem [resolvable:$true] %s29
      %35 = dma.hbm_to_vmem [thread:$0]  %s1, 1024, %s30, [#allocation6], 512, 512, 32
    $region9: #{tpu_custom_call.1} parent=1 // pred_fallthru
      _
    // Predicated region
    $region10: #{tpu_custom_call.1} parent=1 // pred_check
      _
    $region11: #{tpu_custom_call.1} parent=1 // pred_check_branch
      %37 = sbr.rel (0) target = $region13
    $region12: #{tpu_custom_call.1} parent=1 // pred_region
      %s39 = ssub.s32 64, 64
      %40 = vsyncadd [#allocation6], %s39
      %s42 = sshll.u32 [#allocation7], 4
      %s43 = int_to_ptr.vmem [resolvable:$true] %s42
      %45 = dma.hbm_to_vmem [thread:$0]  %s2, 64, %s43, [#allocation6]
    $region13: #{tpu_custom_call.1} parent=1 // pred_fallthru
      _
    // Predicated region
    $region14: #{tpu_custom_call.1} parent=1 // pred_check
      _
    $region15: #{tpu_custom_call.1} parent=1 // pred_check_branch
      %47 = sbr.rel (0) target = $region17
    $region16: #{tpu_custom_call.1} parent=1 // pred_region
      _
    $region17: #{tpu_custom_call.1} parent=1 // pred_fallthru
      _
    // Predicated region
    $region18: #{tpu_custom_call.1} parent=1 // pred_check
      _
    $region19: #{tpu_custom_call.1} parent=1 // pred_check_branch
      %49 = sbr.rel (0) target = $region21
    $region20: #{tpu_custom_call.1} parent=1 // pred_region
      %50 = dma.done [#allocation3], 256
    $region21: #{tpu_custom_call.1} parent=1 // pred_fallthru
      _
    // Predicated region
    $region22: #{tpu_custom_call.1} parent=1 // pred_check
      _
    $region23: #{tpu_custom_call.1} parent=1 // pred_check_branch
      %52 = sbr.rel (0) target = $region25
    $region24: #{tpu_custom_call.1} parent=1 // pred_region
      %53 = dma.done [#allocation6], 1024
    $region25: #{tpu_custom_call.1} parent=1 // pred_fallthru
      _
    // Predicated region
    $region26: #{tpu_custom_call.1} parent=1 // pred_check
      _
    $region27: #{tpu_custom_call.1} parent=1 // pred_check_branch
      %55 = sbr.rel (0) target = $region29
    $region28: #{tpu_custom_call.1} parent=1 // pred_region
      %56 = dma.done [#allocation6], 64
    $region29: #{tpu_custom_call.1} parent=1 // pred_fallthru
      _
    %v58 = vld [vmem:[%s3] sm:$0xff]
    %v59 = vld [vmem:[#allocation7] sm:$0xf]
    %v60 = vld [vmem:[#allocation5] sm:$0xff]
    %v61 = vld [vmem:[#allocation5 + $0x8] sm:$0xff]
    %v62 = vld [vmem:[#allocation5 + $0x10] sm:$0xff]
    %v63 = vld [vmem:[#allocation5 + $0x18] sm:$0xff]
    %v64 = vld [vmem:[#allocation5 + $0x20] sm:$0x1]
    %v65 = vld [vmem:[#allocation5 + $0x28] sm:$0x1]
    %v66 = vld [vmem:[#allocation5 + $0x30] sm:$0x1]
    %v67 = vld [vmem:[#allocation5 + $0x38] sm:$0x1]
    %v68 = vld [vmem:[#allocation2] sm:$0xff]
    %s69 = scalar_lea.vmem [#allocation2], 8
    %v70 = vld [vmem:[%s69] sm:$0xff]
    %v72 = vcombine.high %v68, %v68
    %v75 = vcombine.high %v70, %v70
    %vm77 = vcmask 1043456
    %v78 = vsel %vm77, %v68, 0.0
    %v79 = vsel %vm77, %v72, 0.0
    %v80 = vadd.f32 %v78, %v79
    %v81 = vsel %vm77, %v70, 0.0
    %v82 = vadd.f32 %v80, %v81
    %v83 = vsel %vm77, %v75, 0.0
    %v84 = vadd.f32 %v82, %v83
    %85 = vadd.xlane.f32.xlu0 %v84
    %v86 = vpop.xlane.xlu0 %85
    %v87 = vmul.f32 %v68, %v68
    %v88 = vmul.f32 %v72, %v72
    %v89 = vmul.f32 %v70, %v70
    %v90 = vmul.f32 %v75, %v75
    %v91 = vsel %vm77, %v87, 0.0
    %v92 = vsel %vm77, %v88, 0.0
    %v93 = vadd.f32 %v91, %v92
    %v94 = vsel %vm77, %v89, 0.0
    %v95 = vadd.f32 %v93, %v94
    %v96 = vsel %vm77, %v90, 0.0
    %v97 = vadd.f32 %v95, %v96
    %98 = vadd.xlane.f32.xlu0 %v97
    %v99 = vpop.xlane.xlu0 %98
    %v100 = vmul.f32 %v86, 0.001953125
    %v101 = vmul.f32 %v99, 0.001953125
    %v102 = vmul.f32 %v100, %v100
    %v103 = vsub.f32 %v101, %v102
    %v104 = vadd.f32 %v103, 1e-05
    %v105 = vrsqrt.pop %v104
    %v106 = vmul.f32 %v105, %v58
    %v107 = vmul.f32 %v100, %v106
    %109 = vrot.lane.b32.xlu0 %v107, 1
    %v110 = vpop.permute.xlu0 %109
    %v112 = vsub.f32 %v58, %v110
    %114 = vset.pattern.permute.xlu0 0
    %115 = vperm.xlu0 %114, %v106
    %v116 = vpop.permute.xlu0 %115
    %v118 = vmul.f32 %v68, %v116
    %v119 = vmul.f32 %v72, %v116
    %v120 = vmul.f32 %v70, %v116
    %v121 = vmul.f32 %v75, %v116
    %123 = vset.pattern.permute.xlu0 1
    %124 = vperm.xlu0 %123, %v112
    %v125 = vpop.permute.xlu0 %124
    %v127 = vadd.f32 %v118, %v125
    %v128 = vadd.f32 %v119, %v125
    %v129 = vadd.f32 %v120, %v125
    %v130 = vadd.f32 %v121, %v125
    %v131 = vmax.f32 %v127, 0.0
    %v132 = vmax.f32 %v128, 0.0
    %v133 = vmax.f32 %v129, 0.0
    %v134 = vmax.f32 %v130, 0.0
    %136 = vset.pattern.permute.xlu0 10
    %137 = vperm.xlu0 %136, %v58
    %v138 = vpop.permute.xlu0 %137
    %v140 = vlaneseq
    %v141 = vshrl.u32 %v140, 7
    %v142 = vsub.s32 0, %v141
    %v143 = vrot.slane %v131, %v142
    %v144 = vlaneseq
    %v145 = vshrl.u32 %v144, 7
    %v146 = vsub.s32 0, %v145
    %v147 = vrot.slane %v132, %v146
    %v148 = vlaneseq
    %v149 = vshrl.u32 %v148, 7
    %v150 = vsub.s32 0, %v149
    %v151 = vrot.slane %v133, %v150
    %v152 = vlaneseq
    %v153 = vshrl.u32 %v152, 7
    %v154 = vsub.s32 0, %v153
    %v155 = vrot.slane %v134, %v154
    %v156 = vmul.f32 %v138, %v143
    %v157 = vmul.f32 %v138, %v147
    %v158 = vmul.f32 %v138, %v151
    %v159 = vmul.f32 %v138, %v155
    %160 = vset.pattern.permute.xlu0 11
    %161 = vperm.xlu0 %160, %v58
    %v162 = vpop.permute.xlu0 %161
    %v164 = vlaneseq
    %v165 = vshrl.u32 %v164, 7
    %v166 = vsub.s32 1, %v165
    %v167 = vrot.slane %v131, %v166
    %v168 = vlaneseq
    %v169 = vshrl.u32 %v168, 7
    %v170 = vsub.s32 1, %v169
    %v171 = vrot.slane %v132, %v170
    %v172 = vlaneseq
    %v173 = vshrl.u32 %v172, 7
    %v174 = vsub.s32 1, %v173
    %v175 = vrot.slane %v133, %v174
    %v176 = vlaneseq
    %v177 = vshrl.u32 %v176, 7
    %v178 = vsub.s32 1, %v177
    %v179 = vrot.slane %v134, %v178
    %v180 = vmul.f32 %v162, %v167
    %v181 = vmul.f32 %v162, %v171
    %v182 = vmul.f32 %v162, %v175
    %v183 = vmul.f32 %v162, %v179
    %184 = vset.pattern.permute.xlu0 12
    %185 = vperm.xlu0 %184, %v58
    %v186 = vpop.permute.xlu0 %185
    %v188 = vlaneseq
    %v189 = vshrl.u32 %v188, 7
    %v190 = vsub.s32 2, %v189
    %v191 = vrot.slane %v131, %v190
    %v192 = vlaneseq
    %v193 = vshrl.u32 %v192, 7
    %v194 = vsub.s32 2, %v193
    %v195 = vrot.slane %v132, %v194
    %v196 = vlaneseq
    %v197 = vshrl.u32 %v196, 7
    %v198 = vsub.s32 2, %v197
    %v199 = vrot.slane %v133, %v198
    %v200 = vlaneseq
    %v201 = vshrl.u32 %v200, 7
    %v202 = vsub.s32 2, %v201
    %v203 = vrot.slane %v134, %v202
    %v204 = vmul.f32 %v186, %v191
    %v205 = vmul.f32 %v186, %v195
    %v206 = vmul.f32 %v186, %v199
    %v207 = vmul.f32 %v186, %v203
    %208 = vset.pattern.permute.xlu0 13
    %209 = vperm.xlu0 %208, %v58
    %v210 = vpop.permute.xlu0 %209
    %v212 = vlaneseq
    %v213 = vshrl.u32 %v212, 7
    %v214 = vsub.s32 3, %v213
    %v215 = vrot.slane %v131, %v214
    %v216 = vlaneseq
    %v217 = vshrl.u32 %v216, 7
    %v218 = vsub.s32 3, %v217
    %v219 = vrot.slane %v132, %v218
    %v220 = vlaneseq
    %v221 = vshrl.u32 %v220, 7
    %v222 = vsub.s32 3, %v221
    %v223 = vrot.slane %v133, %v222
    %v224 = vlaneseq
    %v225 = vshrl.u32 %v224, 7
    %v226 = vsub.s32 3, %v225
    %v227 = vrot.slane %v134, %v226
    %v228 = vmul.f32 %v210, %v215
    %v229 = vmul.f32 %v210, %v219
    %v230 = vmul.f32 %v210, %v223
    %v231 = vmul.f32 %v210, %v227
    %v232 = vadd.f32 %v156, %v180
    %v233 = vadd.f32 %v157, %v181
    %v234 = vadd.f32 %v158, %v182
    %v235 = vadd.f32 %v159, %v183
    %v236 = vadd.f32 %v204, %v228
    %v237 = vadd.f32 %v205, %v229
    %v238 = vadd.f32 %v206, %v230
    %v239 = vadd.f32 %v207, %v231
    %v240 = vadd.f32 %v232, %v236
    %v241 = vadd.f32 %v233, %v237
    %v242 = vadd.f32 %v234, %v238
    %v243 = vadd.f32 %v235, %v239
    %244 = vset.pattern.permute.xlu0 2
    %245 = vperm.xlu0 %244, %v58
    %v246 = vpop.permute.xlu0 %245
    %v248 = vadd.f32 %v240, %v246
    %v249 = vadd.f32 %v241, %v246
    %v250 = vadd.f32 %v242, %v246
    %v251 = vadd.f32 %v243, %v246
    %v252 = vsel %vm77, %v248, 0.0
    %v253 = vsel %vm77, %v249, 0.0
    %v254 = vadd.f32 %v252, %v253
    %v255 = vsel %vm77, %v250, 0.0
    %v256 = vadd.f32 %v254, %v255
    %v257 = vsel %vm77, %v251, 0.0
    %v258 = vadd.f32 %v256, %v257
    %259 = vadd.xlane.f32.xlu0 %v258
    %v260 = vpop.xlane.xlu0 %259
    %v261 = vmul.f32 %v248, %v248
    %v262 = vmul.f32 %v249, %v249
    %v263 = vmul.f32 %v250, %v250
    %v264 = vmul.f32 %v251, %v251
    %v265 = vsel %vm77, %v261, 0.0
    %v266 = vsel %vm77, %v262, 0.0
    %v267 = vadd.f32 %v265, %v266
    %v268 = vsel %vm77, %v263, 0.0
    %v269 = vadd.f32 %v267, %v268
    %v270 = vsel %vm77, %v264, 0.0
    %v271 = vadd.f32 %v269, %v270
    %272 = vadd.xlane.f32.xlu0 %v271
    %v273 = vpop.xlane.xlu0 %272
    %v274 = vmul.f32 %v260, 0.001953125
    %v275 = vmul.f32 %v273, 0.001953125
    %v276 = vmul.f32 %v274, %v274
    %v277 = vsub.f32 %v275, %v276
    %v278 = vadd.f32 %v277, 1e-05
    %v279 = vrsqrt.pop %v278
    %v280 = vmul.f32 %v279, %v58
    %v281 = vmul.f32 %v274, %v280
    %283 = vrot.lane.b32.xlu0 %v281, 1
    %v284 = vpop.permute.xlu0 %283
    %v286 = vsub.f32 %v58, %v284
    %288 = vset.pattern.permute.xlu0 3
    %289 = vperm.xlu0 %288, %v280
    %v290 = vpop.permute.xlu0 %289
    %v292 = vmul.f32 %v248, %v290
    %v293 = vmul.f32 %v249, %v290
    %v294 = vmul.f32 %v250, %v290
    %v295 = vmul.f32 %v251, %v290
    %297 = vset.pattern.permute.xlu0 4
    %298 = vperm.xlu0 %297, %v286
    %v299 = vpop.permute.xlu0 %298
    %v301 = vadd.f32 %v292, %v299
    %v302 = vadd.f32 %v293, %v299
    %v303 = vadd.f32 %v294, %v299
    %v304 = vadd.f32 %v295, %v299
    %v305 = vmax.f32 %v301, 0.0
    %v306 = vmax.f32 %v302, 0.0
    %v307 = vmax.f32 %v303, 0.0
    %v308 = vmax.f32 %v304, 0.0
    %309 = vrot.lane.b32.xlu0 %v305, 17
    %v310 = vpop.permute.xlu0 %309
    %311 = vrot.lane.b32.xlu0 %v306, 17
    %v312 = vpop.permute.xlu0 %311
    %313 = vrot.lane.b32.xlu0 %v307, 17
    %v314 = vpop.permute.xlu0 %313
    %315 = vrot.lane.b32.xlu0 %v308, 17
    %v316 = vpop.permute.xlu0 %315
    %v317 = vlaneseq
    %v318 = vand.u32 %v317, 127
    %vm319 = vcmp.lt.s32.totalorder %v318, 17
    %v320 = vsel %vm319, %v314, %v316
    %v321 = vsel %vm319, %v312, %v314
    %v322 = vsel %vm319, %v310, %v312
    %v323 = vsel %vm319, %v316, %v310
    %v324 = vlaneseq
    %v325 = vshrl.u32 %v324, 7
    %v326 = vsub.s32 0, %v325
    %v327 = vrot.slane %v60, %v326
    %v328 = vlaneseq
    %v329 = vshrl.u32 %v328, 7
    %v330 = vsub.s32 0, %v329
    %v331 = vrot.slane %v61, %v330
    %v332 = vlaneseq
    %v333 = vshrl.u32 %v332, 7
    %v334 = vsub.s32 0, %v333
    %v335 = vrot.slane %v62, %v334
    %v336 = vlaneseq
    %v337 = vshrl.u32 %v336, 7
    %v338 = vsub.s32 0, %v337
    %v339 = vrot.slane %v63, %v338
    %v340 = vmul.f32 %v323, %v327
    %v341 = vmul.f32 %v322, %v331
    %v342 = vmul.f32 %v321, %v335
    %v343 = vmul.f32 %v320, %v339
    %344 = vrot.lane.b32.xlu0 %v305, 16
    %v345 = vpop.permute.xlu0 %344
    %346 = vrot.lane.b32.xlu0 %v306, 16
    %v347 = vpop.permute.xlu0 %346
    %348 = vrot.lane.b32.xlu0 %v307, 16
    %v349 = vpop.permute.xlu0 %348
    %350 = vrot.lane.b32.xlu0 %v308, 16
    %v351 = vpop.permute.xlu0 %350
    %vm352 = vcmp.lt.s32.totalorder %v318, 16
    %v353 = vsel %vm352, %v349, %v351
    %v354 = vsel %vm352, %v347, %v349
    %v355 = vsel %vm352, %v345, %v347
    %v356 = vsel %vm352, %v351, %v345
    %v357 = vlaneseq
    %v358 = vshrl.u32 %v357, 7
    %v359 = vsub.s32 1, %v358
    %v360 = vrot.slane %v60, %v359
    %v361 = vlaneseq
    %v362 = vshrl.u32 %v361, 7
    %v363 = vsub.s32 1, %v362
    %v364 = vrot.slane %v61, %v363
    %v365 = vlaneseq
    %v366 = vshrl.u32 %v365, 7
    %v367 = vsub.s32 1, %v366
    %v368 = vrot.slane %v62, %v367
    %v369 = vlaneseq
    %v370 = vshrl.u32 %v369, 7
    %v371 = vsub.s32 1, %v370
    %v372 = vrot.slane %v63, %v371
    %v373 = vmul.f32 %v356, %v360
    %v374 = vmul.f32 %v355, %v364
    %v375 = vmul.f32 %v354, %v368
    %v376 = vmul.f32 %v353, %v372
    %377 = vrot.lane.b32.xlu0 %v305, 15
    %v378 = vpop.permute.xlu0 %377
    %379 = vrot.lane.b32.xlu0 %v306, 15
    %v380 = vpop.permute.xlu0 %379
    %381 = vrot.lane.b32.xlu0 %v307, 15
    %v382 = vpop.permute.xlu0 %381
    %383 = vrot.lane.b32.xlu0 %v308, 15
    %v384 = vpop.permute.xlu0 %383
    %vm385 = vcmp.lt.s32.totalorder %v318, 15
    %v386 = vsel %vm385, %v382, %v384
    %v387 = vsel %vm385, %v380, %v382
    %v388 = vsel %vm385, %v378, %v380
    %v389 = vsel %vm385, %v384, %v378
    %v390 = vlaneseq
    %v391 = vshrl.u32 %v390, 7
    %v392 = vsub.s32 2, %v391
    %v393 = vrot.slane %v60, %v392
    %v394 = vlaneseq
    %v395 = vshrl.u32 %v394, 7
    %v396 = vsub.s32 2, %v395
    %v397 = vrot.slane %v61, %v396
    %v398 = vlaneseq
    %v399 = vshrl.u32 %v398, 7
    %v400 = vsub.s32 2, %v399
    %v401 = vrot.slane %v62, %v400
    %v402 = vlaneseq
    %v403 = vshrl.u32 %v402, 7
    %v404 = vsub.s32 2, %v403
    %v405 = vrot.slane %v63, %v404
    %v406 = vmul.f32 %v389, %v393
    %v407 = vmul.f32 %v388, %v397
    %v408 = vmul.f32 %v387, %v401
    %v409 = vmul.f32 %v386, %v405
    %410 = vrot.lane.b32.xlu0 %v305, 1
    %v411 = vpop.permute.xlu0 %410
    %412 = vrot.lane.b32.xlu0 %v306, 1
    %v413 = vpop.permute.xlu0 %412
    %414 = vrot.lane.b32.xlu0 %v307, 1
    %v415 = vpop.permute.xlu0 %414
    %416 = vrot.lane.b32.xlu0 %v308, 1
    %v417 = vpop.permute.xlu0 %416
    %vm418 = vcmp.lt.s32.totalorder %v318, 1
    %v419 = vsel %vm418, %v415, %v417
    %v420 = vsel %vm418, %v413, %v415
    %v421 = vsel %vm418, %v411, %v413
    %v422 = vsel %vm418, %v417, %v411
    %v423 = vlaneseq
    %v424 = vshrl.u32 %v423, 7
    %v425 = vsub.s32 3, %v424
    %v426 = vrot.slane %v60, %v425
    %v427 = vlaneseq
    %v428 = vshrl.u32 %v427, 7
    %v429 = vsub.s32 3, %v428
    %v430 = vrot.slane %v61, %v429
    %v431 = vlaneseq
    %v432 = vshrl.u32 %v431, 7
    %v433 = vsub.s32 3, %v432
    %v434 = vrot.slane %v62, %v433
    %v435 = vlaneseq
    %v436 = vshrl.u32 %v435, 7
    %v437 = vsub.s32 3, %v436
    %v438 = vrot.slane %v63, %v437
    %v439 = vmul.f32 %v422, %v426
    %v440 = vmul.f32 %v421, %v430
    %v441 = vmul.f32 %v420, %v434
    %v442 = vmul.f32 %v419, %v438
    %443 = vrot.lane.b32.xlu0 %v305, 127
    %v444 = vpop.permute.xlu0 %443
    %445 = vrot.lane.b32.xlu0 %v306, 127
    %v446 = vpop.permute.xlu0 %445
    %447 = vrot.lane.b32.xlu0 %v307, 127
    %v448 = vpop.permute.xlu0 %447
    %449 = vrot.lane.b32.xlu0 %v308, 127
    %v450 = vpop.permute.xlu0 %449
    %vm451 = vcmp.lt.s32.totalorder %v318, 127
    %v452 = vsel %vm451, %v448, %v450
    %v453 = vsel %vm451, %v446, %v448
    %v454 = vsel %vm451, %v444, %v446
    %v455 = vsel %vm451, %v450, %v444
    %v456 = vlaneseq
    %v457 = vshrl.u32 %v456, 7
    %v458 = vsub.s32 5, %v457
    %v459 = vrot.slane %v60, %v458
    %v460 = vlaneseq
    %v461 = vshrl.u32 %v460, 7
    %v462 = vsub.s32 5, %v461
    %v463 = vrot.slane %v61, %v462
    %v464 = vlaneseq
    %v465 = vshrl.u32 %v464, 7
    %v466 = vsub.s32 5, %v465
    %v467 = vrot.slane %v62, %v466
    %v468 = vlaneseq
    %v469 = vshrl.u32 %v468, 7
    %v470 = vsub.s32 5, %v469
    %v471 = vrot.slane %v63, %v470
    %v472 = vmul.f32 %v454, %v459
    %v473 = vmul.f32 %v453, %v463
    %v474 = vmul.f32 %v452, %v467
    %v475 = vmul.f32 %v455, %v471
    %476 = vrot.lane.b32.xlu0 %v305, 113
    %v477 = vpop.permute.xlu0 %476
    %478 = vrot.lane.b32.xlu0 %v306, 113
    %v479 = vpop.permute.xlu0 %478
    %480 = vrot.lane.b32.xlu0 %v307, 113
    %v481 = vpop.permute.xlu0 %480
    %482 = vrot.lane.b32.xlu0 %v308, 113
    %v483 = vpop.permute.xlu0 %482
    %vm484 = vcmp.lt.s32.totalorder %v318, 113
    %v485 = vsel %vm484, %v481, %v483
    %v486 = vsel %vm484, %v479, %v481
    %v487 = vsel %vm484, %v477, %v479
    %v488 = vsel %vm484, %v483, %v477
    %v489 = vlaneseq
    %v490 = vshrl.u32 %v489, 7
    %v491 = vsub.s32 6, %v490
    %v492 = vrot.slane %v60, %v491
    %v493 = vlaneseq
    %v494 = vshrl.u32 %v493, 7
    %v495 = vsub.s32 6, %v494
    %v496 = vrot.slane %v61, %v495
    %v497 = vlaneseq
    %v498 = vshrl.u32 %v497, 7
    %v499 = vsub.s32 6, %v498
    %v500 = vrot.slane %v62, %v499
    %v501 = vlaneseq
    %v502 = vshrl.u32 %v501, 7
    %v503 = vsub.s32 6, %v502
    %v504 = vrot.slane %v63, %v503
    %v505 = vmul.f32 %v487, %v492
    %v506 = vmul.f32 %v486, %v496
    %v507 = vmul.f32 %v485, %v500
    %v508 = vmul.f32 %v488, %v504
    %509 = vrot.lane.b32.xlu0 %v305, 112
    %v510 = vpop.permute.xlu0 %509
    %511 = vrot.lane.b32.xlu0 %v306, 112
    %v512 = vpop.permute.xlu0 %511
    %513 = vrot.lane.b32.xlu0 %v307, 112
    %v514 = vpop.permute.xlu0 %513
    %515 = vrot.lane.b32.xlu0 %v308, 112
    %v516 = vpop.permute.xlu0 %515
    %vm517 = vcmp.lt.s32.totalorder %v318, 112
    %v518 = vsel %vm517, %v514, %v516
    %v519 = vsel %vm517, %v512, %v514
    %v520 = vsel %vm517, %v510, %v512
    %v521 = vsel %vm517, %v516, %v510
    %v522 = vlaneseq
    %v523 = vshrl.u32 %v522, 7
    %v524 = vsub.s32 7, %v523
    %v525 = vrot.slane %v60, %v524
    %v526 = vlaneseq
    %v527 = vshrl.u32 %v526, 7
    %v528 = vsub.s32 7, %v527
    %v529 = vrot.slane %v61, %v528
    %v530 = vlaneseq
    %v531 = vshrl.u32 %v530, 7
    %v532 = vsub.s32 7, %v531
    %v533 = vrot.slane %v62, %v532
    %v534 = vlaneseq
    %v535 = vshrl.u32 %v534, 7
    %v536 = vsub.s32 7, %v535
    %v537 = vrot.slane %v63, %v536
    %v538 = vmul.f32 %v520, %v525
    %v539 = vmul.f32 %v519, %v529
    %v540 = vmul.f32 %v518, %v533
    %v541 = vmul.f32 %v521, %v537
    %542 = vrot.lane.b32.xlu0 %v305, 111
    %v543 = vpop.permute.xlu0 %542
    %544 = vrot.lane.b32.xlu0 %v306, 111
    %v545 = vpop.permute.xlu0 %544
    %546 = vrot.lane.b32.xlu0 %v307, 111
    %v547 = vpop.permute.xlu0 %546
    %548 = vrot.lane.b32.xlu0 %v308, 111
    %v549 = vpop.permute.xlu0 %548
    %vm550 = vcmp.lt.s32.totalorder %v318, 111
    %v551 = vsel %vm550, %v547, %v549
    %v552 = vsel %vm550, %v545, %v547
    %v553 = vsel %vm550, %v543, %v545
    %v554 = vsel %vm550, %v549, %v543
    %v555 = vlaneseq
    %v556 = vshrl.u32 %v555, 7
    %v557 = vsub.s32 0, %v556
    %v558 = vrot.slane %v64, %v557
    %v559 = vlaneseq
    %v560 = vshrl.u32 %v559, 7
    %v561 = vsub.s32 0, %v560
    %v562 = vrot.slane %v65, %v561
    %v563 = vlaneseq
    %v564 = vshrl.u32 %v563, 7
    %v565 = vsub.s32 0, %v564
    %v566 = vrot.slane %v66, %v565
    %v567 = vlaneseq
    %v568 = vshrl.u32 %v567, 7
    %v569 = vsub.s32 0, %v568
    %v570 = vrot.slane %v67, %v569
    %v571 = vmul.f32 %v553, %v558
    %v572 = vmul.f32 %v552, %v562
    %v573 = vmul.f32 %v551, %v566
    %v574 = vmul.f32 %v554, %v570
    %v579 = vrot.slane %v373, 4
    %v580 = vrot.slane %v374, 4
    %v581 = vrot.slane %v375, 4
    %v582 = vrot.slane %v376, 4
    %v591 = vrot.slane %v439, 4
    %v592 = vrot.slane %v440, 4
    %v593 = vrot.slane %v441, 4
    %v594 = vrot.slane %v442, 4
    %v603 = vrot.slane %v472, 4
    %v604 = vrot.slane %v473, 4
    %v605 = vrot.slane %v474, 4
    %v606 = vrot.slane %v475, 4
    %v615 = vrot.slane %v538, 4
    %v616 = vrot.slane %v539, 4
    %v617 = vrot.slane %v540, 4
    %v618 = vrot.slane %v541, 4
    %v623 = vsel %vm77, %v340, %v579
    %v624 = vsel %vm77, %v341, %v580
    %v625 = vsel %vm77, %v342, %v581
    %v626 = vsel %vm77, %v343, %v582
    %v627 = vsel %vm77, %v406, %v591
    %v628 = vsel %vm77, %v407, %v592
    %v629 = vsel %vm77, %v408, %v593
    %v630 = vsel %vm77, %v409, %v594
    %v631 = vsel %vm77, %v305, %v603
    %v632 = vsel %vm77, %v306, %v604
    %v633 = vsel %vm77, %v307, %v605
    %v634 = vsel %vm77, %v308, %v606
    %v635 = vsel %vm77, %v505, %v615
    %v636 = vsel %vm77, %v506, %v616
    %v637 = vsel %vm77, %v507, %v617
    %v638 = vsel %vm77, %v508, %v618
    %v639 = vpack.c.bf16 %v627, %v623
    %v640 = vpack.c.bf16 %v628, %v624
    %v641 = vpack.c.bf16 %v629, %v625
    %v642 = vpack.c.bf16 %v630, %v626
    %v643 = vpack.c.bf16 %v635, %v631
    %v644 = vpack.c.bf16 %v636, %v632
    %v645 = vpack.c.bf16 %v637, %v633
    %v646 = vpack.c.bf16 %v638, %v634
    %v647 = vpack.c.bf16 %v571, %v571
    %v648 = vpack.c.bf16 %v572, %v572
    %v649 = vpack.c.bf16 %v573, %v573
    %v650 = vpack.c.bf16 %v574, %v574
    %651 = vset.pattern.permute.xlu0 5
    %652 = vperm.xlu0 %651, %v58
    %v653 = vpop.permute.xlu0 %652
    %vm655 = vcmask 293888
    %v657 = vsel %vm655, %v59, 0
    %vm659 = vcmask 1041408
    %v661 = vsel %vm659, %v647, 0
    %v664 = vsel %vm659, %v648, 0
    %v667 = vsel %vm659, %v649, 0
    %v670 = vsel %vm659, %v650, 0
    %672 = vmatprep.subr.bf16.mxu0 %v640
    %673 = vmatpush1.bf16.msra.mxu0 %v639
    %674 = vmatprep.subr.bf16.mxu0 %v644
    %675 = vmatpush1.bf16.msra.mxu0 %v643
    %676 = vmatprep.subr.bf16.mxu0 %v664
    %677 = vmatpush1.bf16.msra.mxu0 %v661
    %678 = vmatprep.subr.bf16.mxu0 0
    %679 = vmatpush1.bf16.msra.mxu0 0
    %680 = vmatprep.subr.bf16.mxu0 0
    %681 = vmatpush1.bf16.msra.mxu0 0
    %682 = vmatprep.subr.bf16.mxu0 0
    %683 = vmatpush1.bf16.msra.mxu0 0
    %684 = vmatprep.subr.bf16.mxu0 0
    %685 = vmatpush1.bf16.msra.mxu0 0
    %686 = vmatprep.subr.bf16.mxu0 0
    %687 = vmatpush1.bf16.msra.mxu0 0
    %688 = vmatprep.subr.bf16.mxu0 0
    %689 = vmatpush1.bf16.msra.mxu0 0
    %690 = vmatprep.subr.bf16.mxu0 0
    %691 = vmatpush1.bf16.msra.mxu0 0
    %692 = vmatprep.subr.bf16.mxu0 0
    %693 = vmatpush1.bf16.msra.mxu0 0
    %694 = vmatprep.subr.bf16.mxu0 0
    %695 = vmatpush1.bf16.msra.mxu0 0
    %696 = vmatprep.subr.bf16.mxu0 0
    %697 = vmatpush1.bf16.msra.mxu0 0
    %698 = vmatprep.subr.bf16.mxu0 0
    %699 = vmatpush1.bf16.msra.mxu0 0
    %700 = vmatprep.subr.bf16.mxu0 0
    %701 = vmatpush1.bf16.msra.mxu0 0
    %702 = vmatprep.subr.bf16.mxu0 0
    %703 = vmatpush1.bf16.msra.mxu0 0
    %704 = vmatprep.mubr.bf16.mxu0 0
    %705 = vmatmul.mubr.bf16.gmra.mrb[0].mxu0 %v657
    %v706 = vpop.f32.mrb[0].mxu0
    %v707 = vadd.f32 %v653, %v706
    %v708 = vpop.f32.mrb[0].mxu0
    %v709 = vadd.f32 %v653, %v708
    %v710 = vpop.f32.mrb[0].mxu0
    %v711 = vpop.f32.mrb[0].mxu0
    %712 = vdwg.mxu0
    %713 = vmatprep.subr.bf16.mxu0 %v642
    %714 = vmatpush1.bf16.msra.mxu0 %v641
    %715 = vmatprep.subr.bf16.mxu0 %v646
    %716 = vmatpush1.bf16.msra.mxu0 %v645
    %717 = vmatprep.subr.bf16.mxu0 %v670
    %718 = vmatpush1.bf16.msra.mxu0 %v667
    %719 = vmatprep.subr.bf16.mxu0 0
    %720 = vmatpush1.bf16.msra.mxu0 0
    %721 = vmatprep.subr.bf16.mxu0 0
    %722 = vmatpush1.bf16.msra.mxu0 0
    %723 = vmatprep.subr.bf16.mxu0 0
    %724 = vmatpush1.bf16.msra.mxu0 0
    %725 = vmatprep.subr.bf16.mxu0 0
    %726 = vmatpush1.bf16.msra.mxu0 0
    %727 = vmatprep.subr.bf16.mxu0 0
    %728 = vmatpush1.bf16.msra.mxu0 0
    %729 = vmatprep.subr.bf16.mxu0 0
    %730 = vmatpush1.bf16.msra.mxu0 0
    %731 = vmatprep.subr.bf16.mxu0 0
    %732 = vmatpush1.bf16.msra.mxu0 0
    %733 = vmatprep.subr.bf16.mxu0 0
    %734 = vmatpush1.bf16.msra.mxu0 0
    %735 = vmatprep.subr.bf16.mxu0 0
    %736 = vmatpush1.bf16.msra.mxu0 0
    %737 = vmatprep.subr.bf16.mxu0 0
    %738 = vmatpush1.bf16.msra.mxu0 0
    %739 = vmatprep.subr.bf16.mxu0 0
    %740 = vmatpush1.bf16.msra.mxu0 0
    %741 = vmatprep.subr.bf16.mxu0 0
    %742 = vmatpush1.bf16.msra.mxu0 0
    %743 = vmatprep.subr.bf16.mxu0 0
    %744 = vmatpush1.bf16.msra.mxu0 0
    %745 = vmatprep.mubr.bf16.mxu0 0
    %746 = vmatmul.mubr.bf16.gmra.mrb[0].mxu0 %v657
    %v747 = vpop.f32.mrb[0].mxu0
    %v748 = vadd.f32 %v653, %v747
    %v749 = vpop.f32.mrb[0].mxu0
    %v750 = vadd.f32 %v653, %v749
    %v751 = vpop.f32.mrb[0].mxu0
    %v752 = vpop.f32.mrb[0].mxu0
    %753 = vdwg.mxu0
    %v754 = vsel %vm77, %v707, 0.0
    %v755 = vsel %vm77, %v709, 0.0
    %v756 = vadd.f32 %v754, %v755
    %v757 = vsel %vm77, %v748, 0.0
    %v758 = vadd.f32 %v756, %v757
    %v759 = vsel %vm77, %v750, 0.0
    %v760 = vadd.f32 %v758, %v759
    %761 = vadd.xlane.f32.xlu0 %v760
    %v762 = vpop.xlane.xlu0 %761
    %v763 = vmul.f32 %v707, %v707
    %v764 = vmul.f32 %v709, %v709
    %v765 = vmul.f32 %v748, %v748
    %v766 = vmul.f32 %v750, %v750
    %v767 = vsel %vm77, %v763, 0.0
    %v768 = vsel %vm77, %v764, 0.0
    %v769 = vadd.f32 %v767, %v768
    %v770 = vsel %vm77, %v765, 0.0
    %v771 = vadd.f32 %v769, %v770
    %v772 = vsel %vm77, %v766, 0.0
    %v773 = vadd.f32 %v771, %v772
    %774 = vadd.xlane.f32.xlu0 %v773
    %v775 = vpop.xlane.xlu0 %774
    %v776 = vmul.f32 %v762, 0.001953125
    %v777 = vmul.f32 %v775, 0.001953125
    %v778 = vmul.f32 %v776, %v776
    %v779 = vsub.f32 %v777, %v778
    %v780 = vadd.f32 %v779, 1e-05
    %v781 = vrsqrt.pop %v780
    %v782 = vmul.f32 %v781, %v58
    %v783 = vmul.f32 %v776, %v782
    %785 = vrot.lane.b32.xlu0 %v783, 1
    %v786 = vpop.permute.xlu0 %785
    %v788 = vsub.f32 %v58, %v786
    %790 = vset.pattern.permute.xlu0 6
    %791 = vperm.xlu0 %790, %v782
    %v792 = vpop.permute.xlu0 %791
    %v794 = vmul.f32 %v707, %v792
    %v795 = vmul.f32 %v709, %v792
    %v796 = vmul.f32 %v748, %v792
    %v797 = vmul.f32 %v750, %v792
    %799 = vset.pattern.permute.xlu0 7
    %800 = vperm.xlu0 %799, %v788
    %v801 = vpop.permute.xlu0 %800
    %v803 = vadd.f32 %v794, %v801
    %v804 = vadd.f32 %v795, %v801
    %v805 = vadd.f32 %v796, %v801
    %v806 = vadd.f32 %v797, %v801
    %v807 = vmax.f32 %v803, 0.0
    %v808 = vmax.f32 %v804, 0.0
    %v809 = vmax.f32 %v805, 0.0
    %v810 = vmax.f32 %v806, 0.0
    %v811 = vpack.c.bf16 %v807, %v807
    %v812 = vpack.c.bf16 %v808, %v808
    %v813 = vpack.c.bf16 %v809, %v809
    %v814 = vpack.c.bf16 %v810, %v810
    %815 = vset.pattern.permute.xlu0 8
    %816 = vperm.xlu0 %815, %v58
    %v817 = vpop.permute.xlu0 %816
    %v820 = vunpack.c.l.b16 %v59
    %v821 = vpack.c.b16 %v820, %v820
    %822 = vrot.lane.b32.xlu0 %v821, 92
    %v823 = vpop.permute.xlu0 %822
    %vm824 = vcmask 31744
    %v826 = vsel %vm824, %v823, 0
    %v829 = vsel %vm659, %v811, 0
    %v832 = vsel %vm659, %v812, 0
    %v835 = vsel %vm659, %v813, 0
    %v838 = vsel %vm659, %v814, 0
    %840 = vmatprep.subr.bf16.mxu0 %v832
    %841 = vmatpush1.bf16.msra.mxu0 %v829
    %842 = vmatprep.subr.bf16.mxu0 0
    %843 = vmatpush1.bf16.msra.mxu0 0
    %844 = vmatprep.subr.bf16.mxu0 0
    %845 = vmatpush1.bf16.msra.mxu0 0
    %846 = vmatprep.subr.bf16.mxu0 0
    %847 = vmatpush1.bf16.msra.mxu0 0
    %848 = vmatprep.subr.bf16.mxu0 0
    %849 = vmatpush1.bf16.msra.mxu0 0
    %850 = vmatprep.subr.bf16.mxu0 0
    %851 = vmatpush1.bf16.msra.mxu0 0
    %852 = vmatprep.subr.bf16.mxu0 0
    %853 = vmatpush1.bf16.msra.mxu0 0
    %854 = vmatprep.subr.bf16.mxu0 0
    %855 = vmatpush1.bf16.msra.mxu0 0
    %856 = vmatprep.subr.bf16.mxu0 0
    %857 = vmatpush1.bf16.msra.mxu0 0
    %858 = vmatprep.subr.bf16.mxu0 0
    %859 = vmatpush1.bf16.msra.mxu0 0
    %860 = vmatprep.subr.bf16.mxu0 0
    %861 = vmatpush1.bf16.msra.mxu0 0
    %862 = vmatprep.subr.bf16.mxu0 0
    %863 = vmatpush1.bf16.msra.mxu0 0
    %864 = vmatprep.subr.bf16.mxu0 0
    %865 = vmatpush1.bf16.msra.mxu0 0
    %866 = vmatprep.subr.bf16.mxu0 0
    %867 = vmatpush1.bf16.msra.mxu0 0
    %868 = vmatprep.subr.bf16.mxu0 0
    %869 = vmatpush1.bf16.msra.mxu0 0
    %870 = vmatprep.subr.bf16.mxu0 0
    %871 = vmatpush1.bf16.msra.mxu0 0
    %872 = vmatprep.mubr.bf16.mxu0 0
    %873 = vmatmul.mubr.bf16.gmra.mrb[0].mxu0 %v826
    %v874 = vpop.f32.mrb[0].mxu0
    %v875 = vadd.f32 %v817, %v874
    %v876 = vpop.f32.mrb[0].mxu0
    %v877 = vadd.f32 %v817, %v876
    %v878 = vpop.f32.mrb[0].mxu0
    %v879 = vpop.f32.mrb[0].mxu0
    %880 = vdwg.mxu0
    %881 = vmatprep.subr.bf16.mxu0 %v838
    %882 = vmatpush1.bf16.msra.mxu0 %v835
    %883 = vmatprep.subr.bf16.mxu0 0
    %884 = vmatpush1.bf16.msra.mxu0 0
    %885 = vmatprep.subr.bf16.mxu0 0
    %886 = vmatpush1.bf16.msra.mxu0 0
    %887 = vmatprep.subr.bf16.mxu0 0
    %888 = vmatpush1.bf16.msra.mxu0 0
    %889 = vmatprep.subr.bf16.mxu0 0
    %890 = vmatpush1.bf16.msra.mxu0 0
    %891 = vmatprep.subr.bf16.mxu0 0
    %892 = vmatpush1.bf16.msra.mxu0 0
    %893 = vmatprep.subr.bf16.mxu0 0
    %894 = vmatpush1.bf16.msra.mxu0 0
    %895 = vmatprep.subr.bf16.mxu0 0
    %896 = vmatpush1.bf16.msra.mxu0 0
    %897 = vmatprep.subr.bf16.mxu0 0
    %898 = vmatpush1.bf16.msra.mxu0 0
    %899 = vmatprep.subr.bf16.mxu0 0
    %900 = vmatpush1.bf16.msra.mxu0 0
    %901 = vmatprep.subr.bf16.mxu0 0
    %902 = vmatpush1.bf16.msra.mxu0 0
    %903 = vmatprep.subr.bf16.mxu0 0
    %904 = vmatpush1.bf16.msra.mxu0 0
    %905 = vmatprep.subr.bf16.mxu0 0
    %906 = vmatpush1.bf16.msra.mxu0 0
    %907 = vmatprep.subr.bf16.mxu0 0
    %908 = vmatpush1.bf16.msra.mxu0 0
    %909 = vmatprep.subr.bf16.mxu0 0
    %910 = vmatpush1.bf16.msra.mxu0 0
    %911 = vmatprep.subr.bf16.mxu0 0
    %912 = vmatpush1.bf16.msra.mxu0 0
    %913 = vmatprep.mubr.bf16.mxu0 0
    %914 = vmatmul.mubr.bf16.gmra.mrb[0].mxu0 %v826
    %v915 = vpop.f32.mrb[0].mxu0
    %v916 = vadd.f32 %v817, %v915
    %v917 = vpop.f32.mrb[0].mxu0
    %v918 = vadd.f32 %v817, %v917
    %v919 = vpop.f32.mrb[0].mxu0
    %v920 = vpop.f32.mrb[0].mxu0
    %921 = vdwg.mxu0
    %v922 = vpack.c.bf16 %v68, %v68
    %v923 = vpack.c.bf16 %v72, %v72
    %v924 = vpack.c.bf16 %v70, %v70
    %v925 = vpack.c.bf16 %v75, %v75
    %926 = vset.pattern.permute.xlu0 9
    %927 = vperm.xlu0 %926, %v58
    %v928 = vpop.permute.xlu0 %927
    %930 = vrot.lane.b32.xlu0 %v821, 88
    %v931 = vpop.permute.xlu0 %930
    %v933 = vsel %vm824, %v931, 0
    %v936 = vsel %vm659, %v922, 0
    %v939 = vsel %vm659, %v923, 0
    %v942 = vsel %vm659, %v924, 0
    %v945 = vsel %vm659, %v925, 0
    %947 = vmatprep.subr.bf16.mxu0 %v939
    %948 = vmatpush1.bf16.msra.mxu0 %v936
    %949 = vmatprep.subr.bf16.mxu0 0
    %950 = vmatpush1.bf16.msra.mxu0 0
    %951 = vmatprep.subr.bf16.mxu0 0
    %952 = vmatpush1.bf16.msra.mxu0 0
    %953 = vmatprep.subr.bf16.mxu0 0
    %954 = vmatpush1.bf16.msra.mxu0 0
    %955 = vmatprep.subr.bf16.mxu0 0
    %956 = vmatpush1.bf16.msra.mxu0 0
    %957 = vmatprep.subr.bf16.mxu0 0
    %958 = vmatpush1.bf16.msra.mxu0 0
    %959 = vmatprep.subr.bf16.mxu0 0
    %960 = vmatpush1.bf16.msra.mxu0 0
    %961 = vmatprep.subr.bf16.mxu0 0
    %962 = vmatpush1.bf16.msra.mxu0 0
    %963 = vmatprep.subr.bf16.mxu0 0
    %964 = vmatpush1.bf16.msra.mxu0 0
    %965 = vmatprep.subr.bf16.mxu0 0
    %966 = vmatpush1.bf16.msra.mxu0 0
    %967 = vmatprep.subr.bf16.mxu0 0
    %968 = vmatpush1.bf16.msra.mxu0 0
    %969 = vmatprep.subr.bf16.mxu0 0
    %970 = vmatpush1.bf16.msra.mxu0 0
    %971 = vmatprep.subr.bf16.mxu0 0
    %972 = vmatpush1.bf16.msra.mxu0 0
    %973 = vmatprep.subr.bf16.mxu0 0
    %974 = vmatpush1.bf16.msra.mxu0 0
    %975 = vmatprep.subr.bf16.mxu0 0
    %976 = vmatpush1.bf16.msra.mxu0 0
    %977 = vmatprep.subr.bf16.mxu0 0
    %978 = vmatpush1.bf16.msra.mxu0 0
    %979 = vmatprep.mubr.bf16.mxu0 0
    %980 = vmatmul.mubr.bf16.gmra.mrb[0].mxu0 %v933
    %v981 = vpop.f32.mrb[0].mxu0
    %v982 = vadd.f32 %v928, %v981
    %v983 = vpop.f32.mrb[0].mxu0
    %v984 = vadd.f32 %v928, %v983
    %v985 = vpop.f32.mrb[0].mxu0
    %v986 = vpop.f32.mrb[0].mxu0
    %987 = vdwg.mxu0
    %988 = vmatprep.subr.bf16.mxu0 %v945
    %989 = vmatpush1.bf16.msra.mxu0 %v942
    %990 = vmatprep.subr.bf16.mxu0 0
    %991 = vmatpush1.bf16.msra.mxu0 0
    %992 = vmatprep.subr.bf16.mxu0 0
    %993 = vmatpush1.bf16.msra.mxu0 0
    %994 = vmatprep.subr.bf16.mxu0 0
    %995 = vmatpush1.bf16.msra.mxu0 0
    %996 = vmatprep.subr.bf16.mxu0 0
    %997 = vmatpush1.bf16.msra.mxu0 0
    %998 = vmatprep.subr.bf16.mxu0 0
    %999 = vmatpush1.bf16.msra.mxu0 0
    %1000 = vmatprep.subr.bf16.mxu0 0
    %1001 = vmatpush1.bf16.msra.mxu0 0
    %1002 = vmatprep.subr.bf16.mxu0 0
    %1003 = vmatpush1.bf16.msra.mxu0 0
    %1004 = vmatprep.subr.bf16.mxu0 0
    %1005 = vmatpush1.bf16.msra.mxu0 0
    %1006 = vmatprep.subr.bf16.mxu0 0
    %1007 = vmatpush1.bf16.msra.mxu0 0
    %1008 = vmatprep.subr.bf16.mxu0 0
    %1009 = vmatpush1.bf16.msra.mxu0 0
    %1010 = vmatprep.subr.bf16.mxu0 0
    %1011 = vmatpush1.bf16.msra.mxu0 0
    %1012 = vmatprep.subr.bf16.mxu0 0
    %1013 = vmatpush1.bf16.msra.mxu0 0
    %1014 = vmatprep.subr.bf16.mxu0 0
    %1015 = vmatpush1.bf16.msra.mxu0 0
    %1016 = vmatprep.subr.bf16.mxu0 0
    %1017 = vmatpush1.bf16.msra.mxu0 0
    %1018 = vmatprep.subr.bf16.mxu0 0
    %1019 = vmatpush1.bf16.msra.mxu0 0
    %1020 = vmatprep.mubr.bf16.mxu0 0
    %1021 = vmatmul.mubr.bf16.gmra.mrb[0].mxu0 %v933
    %v1022 = vpop.f32.mrb[0].mxu0
    %v1023 = vadd.f32 %v928, %v1022
    %v1024 = vpop.f32.mrb[0].mxu0
    %v1025 = vadd.f32 %v928, %v1024
    %v1026 = vpop.f32.mrb[0].mxu0
    %v1027 = vpop.f32.mrb[0].mxu0
    %1028 = vdwg.mxu0
    %v1029 = vadd.f32 %v875, %v982
    %v1030 = vadd.f32 %v877, %v984
    %v1031 = vadd.f32 %v916, %v1023
    %v1032 = vadd.f32 %v918, %v1025
    %1033 = vst [vmem:[#allocation8] sm:$0xff] %v1029
    %1034 = vst [vmem:[#allocation8 + $0x8] sm:$0xff] %v1030
    %s1035 = scalar_lea.vmem [#allocation8], 16
    %1036 = vst [vmem:[%s1035] sm:$0xff] %v1031
    %1037 = vst [vmem:[%s1035 + $0x8] sm:$0xff] %v1032
    // Predicated region
    $region30: #{tpu_custom_call.1} parent=1 // pred_check
      _
    $region31: #{tpu_custom_call.1} parent=1 // pred_check_branch
      %1039 = sbr.rel (0) target = $region33
    $region32: #{tpu_custom_call.1} parent=1 // pred_region
      %s1041 = ssub.s32 512, 512
      %1042 = vsyncadd [#allocation4], %s1041
      %s1043 = sshll.u32 [#allocation8], 4
      %s1044 = int_to_ptr.vmem [resolvable:$true] %s1043
      %1049 = dma.vmem_to_hbm [thread:$0]  %s1044, 512, %s4, [#allocation4], 256, 256, 16
    $region33: #{tpu_custom_call.1} parent=1 // pred_fallthru
      _
    // Predicated region
    $region34: #{tpu_custom_call.1} parent=1 // pred_check
      _
    $region35: #{tpu_custom_call.1} parent=1 // pred_check_branch
      %1051 = sbr.rel (0) target = $region37
    $region36: #{tpu_custom_call.1} parent=1 // pred_region
      %1052 = dma.done [#allocation4], 512
    $region37: #{tpu_custom_call.1} parent=1 // pred_fallthru
      _
    %1053 = vsyncpa [#allocation3], 1
    %1054 = vsyncpa [#allocation6], 1
    %1055 = vsyncpa [#allocation4], 1

</llo_original>
